<compile_context>
chip_gen: v6e
topology: v6e:2x2x1
jax: 0.10.0
libtpu: 0.0.40
codegen_flags: <defaults>
</compile_context>

<pallas_src>
import functools

import jax
import jax.numpy as jnp
from jax.experimental import pallas as pl
from jax.experimental.pallas import tpu as pltpu

_LANES = 128
_SUBLANES_I8 = 32          # int8 native sublane tile -> rows_per_tile multiple of 32
_MAX_ROWS_PER_TILE = 4096  # ~2 MiB f32 + 0.5 MiB int8 per pipeline buffer


def _cdiv(a, b):
    return -(-a // b)


def _round_up(x, m):
    return _cdiv(x, m) * m


def _focal_loss_kernel(prob_ref, sel_ref, out_ref, acc_a_ref, acc_b_ref, *, gamma):
    t = pl.program_id(1)

    @pl.when(t == 0)
    def _init():
        acc_a_ref[...] = jnp.zeros_like(acc_a_ref)
        acc_b_ref[...] = jnp.zeros_like(acc_b_ref)

    p = prob_ref[...]                 # (TR, 128) f32, interleaved [p(i,0), p(i,1), ...]
    mask = sel_ref[...] != 0          # one-hot(target) in the SAME flat layout; 0 on padding

    one_m_p = 1.0 - p
    if gamma == 2:                    # integer power -> plain VPU multiplies
        factor = one_m_p * one_m_p
        ls_factor = p * p
    else:
        factor = one_m_p ** gamma
        ls_factor = p ** gamma

    term_a = factor * jnp.log(p)          # at selected lanes p == target_prob
    term_b = ls_factor * jnp.log(one_m_p)

    za = jnp.where(mask, term_a, 0.0)     # select (not multiply) -> no inf*0 NaNs
    zb = jnp.where(mask, term_b, 0.0)

    tr = za.shape[0]
    # Sublane-group fold: (TR,128)->(TR/8,8,128) summed over axis 0 is pure vreg
    # adds; the expensive cross-lane reduce is deferred to the wrapper.
    acc_a_ref[...] += jnp.sum(za.reshape(tr // 8, 8, _LANES), axis=0)
    acc_b_ref[...] += jnp.sum(zb.reshape(tr // 8, 8, _LANES), axis=0)

    @pl.when(t == pl.num_programs(1) - 1)
    def _finalize():
        out_ref[0, 0, :, :] = acc_a_ref[...]
        out_ref[0, 1, :, :] = acc_b_ref[...]


def focal_loss(probability, target, weight, reduction="sum",
               label_smooth=0.01, gamma=2, rows_per_tile=None, n_splits=2):
    """Pallas implementation of FocalLoss.forward (faithful to the PyTorch
    [N] x [N,1] -> [N,N] broadcast, reduced algebraically)."""
    n, c = probability.shape
    assert c == 2, "skip-knn-mt FocalLoss is a binary classifier (C == 2)"
    n_splits = max(1, int(n_splits))

    tgt = target.astype(jnp.int32)
    # One-hot selector with the SAME row-major flat layout as `probability`.
    sel = (tgt[:, None] == jnp.arange(2, dtype=jnp.int32)).astype(jnp.int8)

    flat_n = 2 * n
    rows_needed = _cdiv(flat_n, _LANES)
    if rows_per_tile is None:
        rows_per_tile = min(_MAX_ROWS_PER_TILE,
                            _round_up(_cdiv(rows_needed, n_splits), _SUBLANES_I8))
    rows_per_tile = max(_SUBLANES_I8, _round_up(int(rows_per_tile), _SUBLANES_I8))
    tiles_per_split = _cdiv(rows_needed, rows_per_tile * n_splits)
    total_rows = n_splits * tiles_per_split * rows_per_tile
    pad = total_rows * _LANES - flat_n

    # Reshapes are layout-preserving (free); the pad is the only extra pass and
    # vanishes when the bucketed flat size already matches the grid coverage.
    prob_flat = probability.astype(jnp.float32).reshape(-1)
    prob2d = jnp.pad(prob_flat, (0, pad), constant_values=0.5).reshape(total_rows, _LANES)
    sel2d = jnp.pad(sel.reshape(-1), (0, pad)).reshape(total_rows, _LANES)

    kernel = functools.partial(_focal_loss_kernel, gamma=gamma)

    data_spec = pl.BlockSpec((rows_per_tile, _LANES),
                             lambda s, t: (s * tiles_per_split + t, 0))
    out_spec = pl.BlockSpec((1, 2, 8, _LANES), lambda s, t: (s, 0, 0, 0))

    grid_spec = pltpu.PrefetchScalarGridSpec(
        num_scalar_prefetch=0,
        grid=(n_splits, tiles_per_split),
        in_specs=[data_spec, data_spec],
        out_specs=out_spec,
        scratch_shapes=[pltpu.VMEM((8, _LANES), jnp.float32),
                        pltpu.VMEM((8, _LANES), jnp.float32)],
    )

    parts = pl.pallas_call(
        kernel,
        out_shape=jax.ShapeDtypeStruct((n_splits, 2, 8, _LANES), jnp.float32),
        grid_spec=grid_spec,
        compiler_params=pltpu.CompilerParams(
            dimension_semantics=("parallel", "arbitrary"),
            vmem_limit_bytes=32 * 1024 * 1024,
        ),
    )(prob2d, sel2d)

    # Tiny finalize in plain JAX: cross-lane/split reduce + scalar combine.
    sum_a = jnp.sum(parts[:, 0])     # sum_i (1-tp_i)^g * log(tp_i)
    sum_b = jnp.sum(parts[:, 1])     # sum_i tp_i^g     * log(1-tp_i)

    w = weight.astype(jnp.float32)
    n0 = jnp.sum(tgt == 0).astype(jnp.float32)
    n1 = jnp.float32(n) - n0
    s_alpha = w[0] * n0 + w[1] * n1      # sum_j weight[target_j]
    s_ls_alpha = w[1] * n0 + w[0] * n1   # sum_j weight[~target_j] (== weight[1-target_j], len-2 weight)

    ls = jnp.float32(label_smooth)
    total = -((1.0 - ls) * s_alpha * sum_a + ls * s_ls_alpha * sum_b)
    if reduction == "sum":
        return total
    # 'mean' is over the conceptual broadcast [N, N] focal_loss tensor.
    return total / jnp.float32(n * n)


def _focal_loss_ref(probability, target, weight, reduction="sum",
                    label_smooth=0.01, gamma=2):
    """Pure-JAX reference mirroring the PyTorch code (incl. the [N,N] broadcast)."""
    target_prob = jnp.take_along_axis(probability, target[:, None], axis=-1)  # [N,1]
    alpha = weight[target]                       # [N]
    ls_alpha = weight[1 - target]                # weight[~target] for int {0,1} targets
    factor = (1.0 - target_prob) ** gamma
    ls_factor = target_prob ** gamma
    focal = -((1.0 - label_smooth) * alpha * factor * jnp.log(target_prob)
              + label_smooth * ls_alpha * ls_factor * jnp.log(1.0 - target_prob))
    return focal.sum() if reduction == "sum" else focal.mean()


if __name__ == "__main__":
    key = jax.random.PRNGKey(0)
    k1, k2, k3, k4, k5 = jax.random.split(key, 5)

    C = 2
    weight = jax.random.uniform(k3, (C,), dtype=jnp.float32, minval=0.5, maxval=1.5)

    # --- small case: binary (skip / no-skip) classifier, N = 8 ----------------
    N = 8
    logits = jax.random.normal(k1, (N, C), dtype=jnp.float32)
    probability = jax.nn.softmax(logits, axis=-1)
    target = jax.random.randint(k2, (N,), 0, C, dtype=jnp.int32)

    loss_sum = focal_loss(probability, target, weight, reduction="sum")
    jax.block_until_ready(loss_sum)
    ref_sum = _focal_loss_ref(probability, target, weight, reduction="sum")
    assert jnp.allclose(loss_sum, ref_sum, rtol=1e-4, atol=1e-4), (loss_sum, ref_sum)

    loss_mean = focal_loss(probability, target, weight, reduction="mean")
    ref_mean = _focal_loss_ref(probability, target, weight, reduction="mean")
    assert jnp.allclose(loss_mean, ref_mean, rtol=1e-4, atol=1e-5), (loss_mean, ref_mean)

    # --- larger, non-multiple-of-128 case: exercises padding (via the sel mask),
    #     multi-step accumulation, and both grid splits --------------------------
    N2 = 5000
    logits2 = jax.random.normal(k4, (N2, C), dtype=jnp.float32)
    prob2 = jax.nn.softmax(logits2, axis=-1)
    tgt2 = jax.random.randint(k5, (N2,), 0, C, dtype=jnp.int32)
    ref2 = _focal_loss_ref(prob2, tgt2, weight, reduction="sum")

    loss2 = focal_loss(prob2, tgt2, weight, reduction="sum",
                       rows_per_tile=32, n_splits=2)   # grid (2, 2): multi-step + multi-split
    jax.block_until_ready(loss2)
    assert jnp.allclose(loss2, ref2, rtol=2e-4, atol=1.0), (loss2, ref2)

    loss2b = focal_loss(prob2, tgt2, weight, reduction="sum")  # default tiling path
    jax.block_until_ready(loss2b)
    assert jnp.allclose(loss2b, ref2, rtol=2e-4, atol=1.0), (loss2b, ref2)

    print("KERNEL_OK")
</pallas_src>

<mosaic_0001>
module attributes {stable_mosaic.version = 11 : i64} {
  func.func @_focal_loss_kernel(%arg0: i32, %arg1: i32, %arg2: memref<32x128xf32, #tpu.memory_space<vmem>>, %arg3: memref<32x128xi8, #tpu.memory_space<vmem>>, %arg4: memref<1x2x8x128xf32, #tpu.memory_space<vmem>>, %arg5: memref<8x128xf32, #tpu.memory_space<vmem>>, %arg6: memref<8x128xf32, #tpu.memory_space<vmem>>) attributes {dimension_semantics = [#tpu.dimension_semantics<parallel>, #tpu.dimension_semantics<arbitrary>], iteration_bounds = array<i64: 2, 1>, scalar_prefetch = 0 : i64, scratch_operands = 2 : i64, tpu.core_type = #tpu.core_type<tc>, window_params = [{transform_indices = @transform_0, window_bounds = array<i64: 32, 128>}, {transform_indices = @transform_1, window_bounds = array<i64: 32, 128>}, {transform_indices = @transform_2, window_bounds = array<i64: 1, 2, 8, 128>}]} {
    %c0_i32 = arith.constant 0 : i32
    %0 = arith.cmpi eq, %arg1, %c0_i32 : i32
    %1 = arith.extui %0 : i1 to i32
    %c0_i32_0 = arith.constant 0 : i32
    %2 = arith.cmpi ne, %1, %c0_i32_0 : i32
    scf.if %2 {
      %cst_18 = arith.constant 0.000000e+00 : f32
      %32 = vector.broadcast %cst_18 : f32 to vector<8x128xf32>
      %c0_19 = arith.constant 0 : index
      %c0_20 = arith.constant 0 : index
      %33 = vector.load %arg5[%c0_19, %c0_20] : memref<8x128xf32, #tpu.memory_space<vmem>>, vector<8x128xf32>
      tpu.vector_store %arg5[%c0_19, %c0_20], %32 {strides = array<i32>} : memref<8x128xf32, #tpu.memory_space<vmem>>, vector<8x128xf32>,
      %cst_21 = arith.constant 0.000000e+00 : f32
      %34 = vector.broadcast %cst_21 : f32 to vector<8x128xf32>
      %c0_22 = arith.constant 0 : index
      %c0_23 = arith.constant 0 : index
      %35 = vector.load %arg6[%c0_22, %c0_23] : memref<8x128xf32, #tpu.memory_space<vmem>>, vector<8x128xf32>
      tpu.vector_store %arg6[%c0_22, %c0_23], %34 {strides = array<i32>} : memref<8x128xf32, #tpu.memory_space<vmem>>, vector<8x128xf32>,
    } else {
    }
    %c0 = arith.constant 0 : index
    %c0_1 = arith.constant 0 : index
    %3 = vector.load %arg2[%c0, %c0_1] : memref<32x128xf32, #tpu.memory_space<vmem>>, vector<32x128xf32>
    %c0_2 = arith.constant 0 : index
    %c0_3 = arith.constant 0 : index
    %4 = vector.load %arg3[%c0_2, %c0_3] : memref<32x128xi8, #tpu.memory_space<vmem>>, vector<32x128xi8>
    %c0_i8 = arith.constant 0 : i8
    %5 = vector.broadcast %c0_i8 : i8 to vector<32x128xi8>
    %6 = arith.cmpi ne, %4, %5 : vector<32x128xi8>
    %cst = arith.constant 1.000000e+00 : f32
    %7 = vector.broadcast %cst : f32 to vector<32x128xf32>
    %8 = arith.subf %7, %3 : vector<32x128xf32>
    %9 = arith.mulf %8, %8 : vector<32x128xf32>
    %10 = arith.mulf %3, %3 : vector<32x128xf32>
    %11 = math.log %3 : vector<32x128xf32>
    %12 = arith.mulf %9, %11 : vector<32x128xf32>
    %13 = math.log %8 : vector<32x128xf32>
    %14 = arith.mulf %10, %13 : vector<32x128xf32>
    %cst_4 = arith.constant 0.000000e+00 : f32
    %15 = vector.broadcast %cst_4 : f32 to vector<32x128xf32>
    %16 = arith.select %6, %12, %15 : vector<32x128xi1>, vector<32x128xf32>
    %cst_5 = arith.constant 0.000000e+00 : f32
    %17 = vector.broadcast %cst_5 : f32 to vector<32x128xf32>
    %18 = arith.select %6, %14, %17 : vector<32x128xi1>, vector<32x128xf32>
    %c0_6 = arith.constant 0 : index
    %c0_7 = arith.constant 0 : index
    %19 = vector.load %arg5[%c0_6, %c0_7] : memref<8x128xf32, #tpu.memory_space<vmem>>, vector<8x128xf32>
    %20 = vector.shape_cast %16 : vector<32x128xf32> to vector<4x8x128xf32>
    %cst_8 = arith.constant dense<0.000000e+00> : vector<8x128xf32>
    %21 = vector.multi_reduction <add>, %20, %cst_8 [0] : vector<4x8x128xf32> to vector<8x128xf32>
    %22 = arith.addf %19, %21 : vector<8x128xf32>
    %c0_9 = arith.constant 0 : index
    %c0_10 = arith.constant 0 : index
    %23 = vector.load %arg5[%c0_9, %c0_10] : memref<8x128xf32, #tpu.memory_space<vmem>>, vector<8x128xf32>
    tpu.vector_store %arg5[%c0_9, %c0_10], %22 {strides = array<i32>} : memref<8x128xf32, #tpu.memory_space<vmem>>, vector<8x128xf32>,
    %c0_11 = arith.constant 0 : index
    %c0_12 = arith.constant 0 : index
    %24 = vector.load %arg6[%c0_11, %c0_12] : memref<8x128xf32, #tpu.memory_space<vmem>>, vector<8x128xf32>
    %25 = vector.shape_cast %18 : vector<32x128xf32> to vector<4x8x128xf32>
    %cst_13 = arith.constant dense<0.000000e+00> : vector<8x128xf32>
    %26 = vector.multi_reduction <add>, %25, %cst_13 [0] : vector<4x8x128xf32> to vector<8x128xf32>
    %27 = arith.addf %24, %26 : vector<8x128xf32>
    %c0_14 = arith.constant 0 : index
    %c0_15 = arith.constant 0 : index
    %28 = vector.load %arg6[%c0_14, %c0_15] : memref<8x128xf32, #tpu.memory_space<vmem>>, vector<8x128xf32>
    tpu.vector_store %arg6[%c0_14, %c0_15], %27 {strides = array<i32>} : memref<8x128xf32, #tpu.memory_space<vmem>>, vector<8x128xf32>,
    %c0_i32_16 = arith.constant 0 : i32
    %29 = arith.cmpi eq, %arg1, %c0_i32_16 : i32
    %30 = arith.extui %29 : i1 to i32
    %c0_i32_17 = arith.constant 0 : i32
    %31 = arith.cmpi ne, %30, %c0_i32_17 : i32
    scf.if %31 {
      %c0_18 = arith.constant 0 : index
      %c0_19 = arith.constant 0 : index
      %32 = vector.load %arg5[%c0_18, %c0_19] : memref<8x128xf32, #tpu.memory_space<vmem>>, vector<8x128xf32>
      %c0_20 = arith.constant 0 : index
      %c0_21 = arith.constant 0 : index
      %c0_22 = arith.constant 0 : index
      %c0_23 = arith.constant 0 : index
      %33 = vector.load %arg4[%c0_20, %c0_21, %c0_22, %c0_23] : memref<1x2x8x128xf32, #tpu.memory_space<vmem>>, vector<1x1x8x128xf32>
      %34 = vector.shape_cast %33 : vector<1x1x8x128xf32> to vector<8x128xf32>
      %35 = vector.shape_cast %32 : vector<8x128xf32> to vector<1x1x8x128xf32>
      tpu.vector_store %arg4[%c0_20, %c0_21, %c0_22, %c0_23], %35 {strides = array<i32>} : memref<1x2x8x128xf32, #tpu.memory_space<vmem>>, vector<1x1x8x128xf32>,
      %c0_24 = arith.constant 0 : index
      %c0_25 = arith.constant 0 : index
      %36 = vector.load %arg6[%c0_24, %c0_25] : memref<8x128xf32, #tpu.memory_space<vmem>>, vector<8x128xf32>
      %c0_26 = arith.constant 0 : index
      %c1 = arith.constant 1 : index
      %c0_27 = arith.constant 0 : index
      %c0_28 = arith.constant 0 : index
      %37 = vector.load %arg4[%c0_26, %c1, %c0_27, %c0_28] : memref<1x2x8x128xf32, #tpu.memory_space<vmem>>, vector<1x1x8x128xf32>
      %38 = vector.shape_cast %37 : vector<1x1x8x128xf32> to vector<8x128xf32>
      %39 = vector.shape_cast %36 : vector<8x128xf32> to vector<1x1x8x128xf32>
      tpu.vector_store %arg4[%c0_26, %c1, %c0_27, %c0_28], %39 {strides = array<i32>} : memref<1x2x8x128xf32, #tpu.memory_space<vmem>>, vector<1x1x8x128xf32>,
    } else {
    }
    return
  }
  func.func @transform_0(%arg0: i32, %arg1: i32) -> (i32, i32) {
    %c1_i32 = arith.constant 1 : i32
    %0 = arith.muli %arg0, %c1_i32 : i32
    %1 = arith.addi %0, %arg1 : i32
    %c0_i32 = arith.constant 0 : i32
    %c0_i32_0 = arith.constant 0 : i32
    return %1, %c0_i32 : i32, i32
  }
  func.func @transform_1(%arg0: i32, %arg1: i32) -> (i32, i32) {
    %c1_i32 = arith.constant 1 : i32
    %0 = arith.muli %arg0, %c1_i32 : i32
    %1 = arith.addi %0, %arg1 : i32
    %c0_i32 = arith.constant 0 : i32
    %c0_i32_0 = arith.constant 0 : i32
    return %1, %c0_i32 : i32, i32
  }
  func.func @transform_2(%arg0: i32, %arg1: i32) -> (i32, i32, i32, i32) {
    %c0_i32 = arith.constant 0 : i32
    %c0_i32_0 = arith.constant 0 : i32
    %c0_i32_1 = arith.constant 0 : i32
    %c0_i32_2 = arith.constant 0 : i32
    return %arg0, %c0_i32, %c0_i32_0, %c0_i32_1 : i32, i32, i32, i32
  }
}

</mosaic_0001>

<llo_original>
// kernel: tpu_custom_call.1
$region0: #{tpu_custom_call.1}
  #allocation0 [shape = 'u32[]', space=smem, size = 0x4, offset = 0x4, fixed_abs, tag = 'smem constant byte address 0x4 - core index']
  #allocation1 [shape = 'u32[144,128]{1,0:T(1,128)}', space=vmem, size = 0x12000, scoped, tag = 'internal scratch']
  #allocation2 [shape = 'f32[8,128]{1,0:T(8,128)}', space=vmem, size = 0x1000, scoped, tag = 'scratch operand']
  #allocation3 [shape = 'f32[8,128]{1,0:T(8,128)}', space=vmem, size = 0x1000, scoped, tag = 'scratch operand']
  %s0 = inlined_call_operand.hbm [shape: f32[64,128], index: 0, kind: input, shape index: {}]
  %s1 = inlined_call_operand.hbm [shape: s8[64,128], index: 1, kind: input, shape index: {}]
  %s2 = inlined_call_operand.hbm [shape: f32[2,2,8,128], index: 2, kind: output, shape index: {}]
  %s3 = sld [smem:[#allocation0]]
  $region57: #{tpu_custom_call.1} parent=0
    _
  %s5 = ssub.s32 1, %s3
  %s6 = scalar_select 0, %s5, %s3
  $region1: #{tpu_custom_call.1} parent=0
    #allocation4 [shape = 'u8[32768]{0}', space=vmem, size = 0x8000, scoped, tag = 'input window, operand 0']
    #allocation5 [shape = 's32[2]{0}', space=sflag, size = 0x8, scoped, tag = 'scoped memory for tpu_custom_call.1']
    #allocation6 [shape = 's32[2]{0}', space=sflag, size = 0x8, scoped, tag = 'scoped memory for tpu_custom_call.1']
    #allocation7 [shape = 'u8[8192]{0}', space=vmem, size = 0x2000, scoped, tag = 'input window, operand 1']
    #allocation8 [shape = 's32[2]{0}', space=sflag, size = 0x8, scoped, tag = 'scoped memory for tpu_custom_call.1']
    #allocation9 [shape = 'u8[16384]{0}', space=vmem, size = 0x4000, scoped, tag = 'output window, operand 0']
    %7 = vsyncpa [#allocation5], 0
    %s8 = scalar_lea.sflag [#allocation5], 1
    %9 = vsyncpa %s8, 0
    %10 = vsyncpa [#allocation8], 0
    %s11 = scalar_lea.sflag [#allocation8], 1
    %12 = vsyncpa %s11, 0
    %13 = vsyncpa [#allocation6], 0
    %s14 = scalar_lea.sflag [#allocation6], 1
    %15 = vsyncpa %s14, 0
    loop: start=0, step=1, limit=4
    $region2: #{tpu_custom_call.1} parent=1 // loop_pre_header
      _
    $region3: #{tpu_custom_call.1} parent=1 // loop_header
      %s17 = sphi 0, %s21
      %p18 = scmp.ge.s32.totalorder %s17, 4
      %s24 = sphi 0, %s36
      %s25 = sphi 0, %s32
      %s26 = sphi 0, %s24
      %s27 = sphi 0, %s25
      %s28 = sphi 0, %s26
      %s29 = sphi 0, %s27
      %s41 = sphi 0, %s43
      %s44 = sphi 0, %s41
      %s45 = sphi 0, %s44
      %s61 = sphi 0, %s45
      %s69 = sphi 0, %s71
      %s72 = sphi 0, %s69
      %s73 = sphi 0, %s72
      %s89 = sphi 0, %s73
      %s95 = sphi 0, %s97
      %s98 = sphi 0, %s95
      %s99 = sphi 0, %s98
      %s115 = sphi 0, %s99
    $region4: #{tpu_custom_call.1} parent=1 // loop_header_branch
      %20 = sbr.rel (%p18) target = $region8
    $region5: #{tpu_custom_call.1} parent=1 // loop_body
      %s22 = ssub.s32 %s17, 1
      %s23 = ssub.s32 %s17, 2
      %s30 = sadd.s32 1, %s25
      %p31 = scmp.ge.s32.totalorder %s30, 1
      %s32 = scalar_select %p31, 0, %s30
      %s33 = sadd.s32 1, %s24
      %s34 = scalar_select %p31, %s33, %s24
      %p35 = scmp.ge.s32.totalorder %s34, 2
      %s36 = scalar_select %p35, 0, %s34
      %s37 = sadd.s32 %s24, %s25
      %s38 = sadd.s32 %s36, %s32
      %s39 = ssub.s32 %s37, %s38
      %p40 = scmp.eq.s32.totalorder %s39, 0
      %s42 = sadd.s32 %s41, 1
      %s43 = scalar_select %p40, %s41, %s42
      %p46 = pneg %p40
      %p47 = scmp.eq.s32.totalorder %s17, 1
      %p48 = por %p46, %p47
      %p49 = scmp.ne.s32.totalorder %s41, %s44
      %p50 = scmp.eq.s32.totalorder %s17, 0
      %p51 = por %p49, %p50
      %p52 = scmp.ne.s32.totalorder %s41, %s44
      %p53 = scmp.eq.s32.totalorder %s22, 1
      %p54 = por %p52, %p53
      %p55 = scmp.ne.s32.totalorder %s44, %s45
      %p56 = scmp.eq.s32.totalorder %s22, 0
      %p57 = por %p55, %p56
      %p58 = scmp.ne.s32.totalorder %s44, %s45
      %p59 = scmp.eq.s32.totalorder %s23, 1
      %p60 = por %p58, %p59
      %p62 = scmp.ne.s32.totalorder %s45, %s61
      %p63 = scmp.eq.s32.totalorder %s23, 0
      %p64 = por %p62, %p63
      %s65 = sadd.s32 %s24, %s25
      %s66 = sadd.s32 %s36, %s32
      %s67 = ssub.s32 %s65, %s66
      %p68 = scmp.eq.s32.totalorder %s67, 0
      %s70 = sadd.s32 %s69, 1
      %s71 = scalar_select %p68, %s69, %s70
      %p74 = pneg %p68
      %p75 = scmp.eq.s32.totalorder %s17, 1
      %p76 = por %p74, %p75
      %p77 = scmp.ne.s32.totalorder %s69, %s72
      %p78 = scmp.eq.s32.totalorder %s17, 0
      %p79 = por %p77, %p78
      %p80 = scmp.ne.s32.totalorder %s69, %s72
      %p81 = scmp.eq.s32.totalorder %s22, 1
      %p82 = por %p80, %p81
      %p83 = scmp.ne.s32.totalorder %s72, %s73
      %p84 = scmp.eq.s32.totalorder %s22, 0
      %p85 = por %p83, %p84
      %p86 = scmp.ne.s32.totalorder %s72, %s73
      %p87 = scmp.eq.s32.totalorder %s23, 1
      %p88 = por %p86, %p87
      %p90 = scmp.ne.s32.totalorder %s73, %s89
      %p91 = scmp.eq.s32.totalorder %s23, 0
      %p92 = por %p90, %p91
      %s93 = ssub.s32 %s24, %s36
      %p94 = scmp.eq.s32.totalorder %s93, 0
      %s96 = sadd.s32 %s95, 1
      %s97 = scalar_select %p94, %s95, %s96
      %p100 = pneg %p94
      %p101 = scmp.eq.s32.totalorder %s17, 1
      %p102 = por %p100, %p101
      %p103 = scmp.ne.s32.totalorder %s95, %s98
      %p104 = scmp.eq.s32.totalorder %s17, 0
      %p105 = por %p103, %p104
      %p106 = scmp.ne.s32.totalorder %s95, %s98
      %p107 = scmp.eq.s32.totalorder %s22, 1
      %p108 = por %p106, %p107
      %p109 = scmp.ne.s32.totalorder %s98, %s99
      %p110 = scmp.eq.s32.totalorder %s22, 0
      %p111 = por %p109, %p110
      %p112 = scmp.ne.s32.totalorder %s98, %s99
      %p113 = scmp.eq.s32.totalorder %s23, 1
      %p114 = por %p112, %p113
      %p116 = scmp.ne.s32.totalorder %s99, %s115
      %p117 = scmp.eq.s32.totalorder %s23, 0
      %p118 = por %p116, %p117
      %p119 = scmp.le.s32.totalorder 1, %s17
      %p120 = scmp.lt.s32.totalorder %s17, 3
      %p121 = pnand %p119, %p120
      %p122 = pneg %p121
      // Predicated region
      $region9: #{tpu_custom_call.1} parent=5 // pred_check
        _
      $region10: #{tpu_custom_call.1} parent=5 // pred_check_branch
        %124 = sbr.rel (%p121) target = $region12
      $region11: #{tpu_custom_call.1} parent=5 // pred_region
        %s125 = ssub.s32 %s17, 1
      $region12: #{tpu_custom_call.1} parent=5 // pred_fallthru
        _
      %p126 = scmp.lt.s32.totalorder %s17, 2
      // Predicated region
      $region13: #{tpu_custom_call.1} parent=5 // pred_check
        %p127 = pneg %p126
      $region14: #{tpu_custom_call.1} parent=5 // pred_check_branch
        %129 = sbr.rel (%p127) target = $region16
      $region15: #{tpu_custom_call.1} parent=5 // pred_region
        // Predicated region
        $region17: #{tpu_custom_call.1} parent=15 // pred_check
          %p130 = pneg %p51
        $region18: #{tpu_custom_call.1} parent=15 // pred_check_branch
          %132 = sbr.rel (%p130) target = $region20
        $region19: #{tpu_custom_call.1} parent=15 // pred_region
          %s133 = sand.u32 %s41, 1
          %s134 = scalar_lea.sflag [#allocation5], %s133
          %s135 = sand.u32 %s41, 1
          %s136 = smul.addr %s135, 32
          %s137 = scalar_lea.vmem [#allocation4], %s136
          %s138 = sadd.s32 %s24, %s25
          %s139 = smul.u32 4, %s138
          %s141 = ssub.s32 512, 512
          %142 = vsyncadd %s134, %s141
          %s143 = smul.addr %s139, 128
          %s144 = scalar_lea.hbm %s0, %s143
          %s145 = sshll.u32 %s137, 4
          %s146 = int_to_ptr.vmem [resolvable:$true] %s145
          %151 = dma.hbm_to_vmem [thread:$0]  %s144, 512, %s146, %s134, 128, 128, 8
        $region20: #{tpu_custom_call.1} parent=15 // pred_fallthru
          _
        // Predicated region
        $region21: #{tpu_custom_call.1} parent=15 // pred_check
          %p152 = pneg %p79
        $region22: #{tpu_custom_call.1} parent=15 // pred_check_branch
          %154 = sbr.rel (%p152) target = $region24
        $region23: #{tpu_custom_call.1} parent=15 // pred_region
          %s155 = sand.u32 %s69, 1
          %s156 = scalar_lea.sflag [#allocation8], %s155
          %s157 = sand.u32 %s69, 1
          %s158 = smul.addr %s157, 8
          %s159 = scalar_lea.vmem [#allocation7], %s158
          %s160 = sadd.s32 %s24, %s25
          %s162 = ssub.s32 128, 128
          %163 = vsyncadd %s156, %s162
          %s164 = smul.addr %s160, 128
          %s165 = scalar_lea.hbm %s1, %s164
          %s167 = sshll.u32 %s159, 4
          %s168 = int_to_ptr.vmem [resolvable:$true] %s167
          %170 = dma.hbm_to_vmem [thread:$0]  %s165, 128, %s168, %s156
        $region24: #{tpu_custom_call.1} parent=15 // pred_fallthru
          _
      $region16: #{tpu_custom_call.1} parent=5 // pred_fallthru
        _
      %p171 = scmp.le.s32.totalorder 1, %s17
      %p172 = scmp.lt.s32.totalorder %s17, 3
      %p173 = pnand %p171, %p172
      %p174 = pneg %p173
      // Predicated region
      $region25: #{tpu_custom_call.1} parent=5 // pred_check
        _
      $region26: #{tpu_custom_call.1} parent=5 // pred_check_branch
        %176 = sbr.rel (%p173) target = $region28
      $region27: #{tpu_custom_call.1} parent=5 // pred_region
        %s177 = ssub.s32 %s17, 1
        %s178 = sand.u32 %s44, 1
        %s179 = scalar_lea.sflag [#allocation5], %s178
        %s180 = sand.u32 %s44, 1
        %s181 = smul.addr %s180, 32
        %s182 = scalar_lea.vmem [#allocation4], %s181
        // Predicated region
        $region29: #{tpu_custom_call.1} parent=27 // pred_check
          %p183 = pneg %p57
        $region30: #{tpu_custom_call.1} parent=27 // pred_check_branch
          %185 = sbr.rel (%p183) target = $region32
        $region31: #{tpu_custom_call.1} parent=27 // pred_region
          %186 = dma.done %s179, 512
        $region32: #{tpu_custom_call.1} parent=27 // pred_fallthru
          _
        %s187 = sand.u32 %s72, 1
        %s188 = scalar_lea.sflag [#allocation8], %s187
        %s189 = sand.u32 %s72, 1
        %s190 = smul.addr %s189, 8
        %s191 = scalar_lea.vmem [#allocation7], %s190
        // Predicated region
        $region33: #{tpu_custom_call.1} parent=27 // pred_check
          %p192 = pneg %p85
        $region34: #{tpu_custom_call.1} parent=27 // pred_check_branch
          %194 = sbr.rel (%p192) target = $region36
        $region35: #{tpu_custom_call.1} parent=27 // pred_region
          %195 = dma.done %s188, 128
        $region36: #{tpu_custom_call.1} parent=27 // pred_fallthru
          _
        %s196 = sand.u32 %s44, 1
        %s197 = scalar_lea.sflag [#allocation5], %s196
        %s198 = sand.u32 %s44, 1
        %s199 = smul.addr %s198, 32
        %s200 = scalar_lea.vmem [#allocation4], %s199
        %p201 = pneg %p57
        %p202 = pneg %p54
        %s203 = sand.u32 %s72, 1
        %s204 = scalar_lea.sflag [#allocation8], %s203
        %s205 = sand.u32 %s72, 1
        %s206 = smul.addr %s205, 8
        %s207 = scalar_lea.vmem [#allocation7], %s206
        %p208 = pneg %p85
        %p209 = pneg %p82
        %p210 = pneg %p111
        %p211 = pneg %p108
        %s212 = sand.u32 %s98, 1
        %s213 = scalar_lea.sflag [#allocation6], %s212
        %s214 = sand.u32 %s98, 1
        %s215 = smul.addr %s214, 16
        %s216 = scalar_lea.vmem [#allocation9], %s215
        %s217 = sadd.s32 %s26, %s27
        %s218 = smul.u32 4, %s217
        %s219 = sadd.s32 %s26, %s27
        %p222 = scmp.eq.s32.totalorder %s27, 0
        // Predicated region
        $region37: #{tpu_custom_call.1} parent=27 // pred_check
          %p223 = pneg %p222
        $region38: #{tpu_custom_call.1} parent=27 // pred_check_branch
          %225 = sbr.rel (%p223) target = $region40
        $region39: #{tpu_custom_call.1} parent=27 // pred_region
          %226 = vst [vmem:[#allocation2] sm:$0xff] 0.0
          %227 = vst [vmem:[#allocation3] sm:$0xff] 0.0
        $region40: #{tpu_custom_call.1} parent=27 // pred_fallthru
          _
        %v228 = vld [vmem:[%s182] sm:$0xff]
        %v229 = vld [vmem:[%s182 + $0x8] sm:$0xff]
        %v230 = vld [vmem:[%s182 + $0x10] sm:$0xff]
        %v231 = vld [vmem:[%s182 + $0x18] sm:$0xff]
        %v232 = vld [vmem:[%s191] sm:$0xff]
        %vm233 = vnez %v232
        %v234 = vsub.f32 1.0, %v228
        %v235 = vsub.f32 1.0, %v229
        %v236 = vsub.f32 1.0, %v230
        %v237 = vsub.f32 1.0, %v231
        %v238 = vmul.f32 %v234, %v234
        %v239 = vmul.f32 %v235, %v235
        %v240 = vmul.f32 %v236, %v236
        %v241 = vmul.f32 %v237, %v237
        %v242 = vmul.f32 %v228, %v228
        %v243 = vmul.f32 %v229, %v229
        %v244 = vmul.f32 %v230, %v230
        %v245 = vmul.f32 %v231, %v231
        %v246 = vlog2.pop %v228
        %v247 = vmul.f32 %v246, 0.6931472
        %v248 = vlog2.pop %v229
        %v249 = vmul.f32 %v248, 0.6931472
        %v250 = vlog2.pop %v230
        %v251 = vmul.f32 %v250, 0.6931472
        %v252 = vlog2.pop %v231
        %v253 = vmul.f32 %v252, 0.6931472
        %v254 = vmul.f32 %v238, %v247
        %v255 = vmul.f32 %v239, %v249
        %v256 = vmul.f32 %v240, %v251
        %v257 = vmul.f32 %v241, %v253
        %v258 = vlog2.pop %v234
        %v259 = vmul.f32 %v258, 0.6931472
        %v260 = vlog2.pop %v235
        %v261 = vmul.f32 %v260, 0.6931472
        %v262 = vlog2.pop %v236
        %v263 = vmul.f32 %v262, 0.6931472
        %v264 = vlog2.pop %v237
        %v265 = vmul.f32 %v264, 0.6931472
        %v266 = vmul.f32 %v242, %v259
        %v267 = vmul.f32 %v243, %v261
        %v268 = vmul.f32 %v244, %v263
        %v269 = vmul.f32 %v245, %v265
        %v270 = vsel %vm233, 16843009, 0
        %v271 = vunpack.c.0.s8 %v270
        %v272 = vunpack.c.1.s8 %v270
        %v273 = vunpack.c.2.s8 %v270
        %v274 = vunpack.c.3.s8 %v270
        %v275 = vpack.c.b16 %v271, %v271
        %v276 = vpack.c.b8 %v275, %v275
        %v277 = vpack.c.b16 %v272, %v272
        %v278 = vpack.c.b8 %v277, %v277
        %v279 = vpack.c.b16 %v273, %v273
        %v280 = vpack.c.b8 %v279, %v279
        %v281 = vpack.c.b16 %v274, %v274
        %v282 = vpack.c.b8 %v281, %v281
        %vm283 = vnez %v276
        %vm284 = vnez %v278
        %vm285 = vnez %v280
        %vm286 = vnez %v282
        %v287 = vsel %vm283, 16843009, 0
        %v288 = vsel %vm284, 16843009, 0
        %v289 = vsel %vm285, 16843009, 0
        %v290 = vsel %vm286, 16843009, 0
        %v291 = vunpack.c.0.s8 %v287
        %v292 = vunpack.c.0.s8 %v288
        %v293 = vunpack.c.0.s8 %v289
        %v294 = vunpack.c.0.s8 %v290
        %vm295 = vcmp.ne.s32.totalorder %v291, 0
        %vm296 = vcmp.ne.s32.totalorder %v292, 0
        %vm297 = vcmp.ne.s32.totalorder %v293, 0
        %vm298 = vcmp.ne.s32.totalorder %v294, 0
        %v299 = vsel %vm295, %v254, 0.0
        %v300 = vsel %vm296, %v255, 0.0
        %v301 = vsel %vm297, %v256, 0.0
        %v302 = vsel %vm298, %v257, 0.0
        %v303 = vsel %vm295, %v266, 0.0
        %v304 = vsel %vm296, %v267, 0.0
        %v305 = vsel %vm297, %v268, 0.0
        %v306 = vsel %vm298, %v269, 0.0
        %v307 = vld [vmem:[#allocation2] sm:$0xff]
        %v308 = vadd.f32 %v299, %v300
        %v309 = vadd.f32 %v308, %v301
        %v310 = vadd.f32 %v309, %v302
        %v311 = vadd.f32 %v307, %v310
        %312 = vst [vmem:[#allocation2] sm:$0xff] %v311
        %v313 = vld [vmem:[#allocation3] sm:$0xff]
        %v314 = vadd.f32 %v303, %v304
        %v315 = vadd.f32 %v314, %v305
        %v316 = vadd.f32 %v315, %v306
        %v317 = vadd.f32 %v313, %v316
        %318 = vst [vmem:[#allocation3] sm:$0xff] %v317
        // Predicated region
        $region41: #{tpu_custom_call.1} parent=27 // pred_check
          %p319 = pneg %p222
        $region42: #{tpu_custom_call.1} parent=27 // pred_check_branch
          %321 = sbr.rel (%p319) target = $region44
        $region43: #{tpu_custom_call.1} parent=27 // pred_region
          %v322 = vld [vmem:[#allocation2] sm:$0xff]
          %323 = vst [vmem:[%s216] sm:$0xff] %v322
          %v324 = vld [vmem:[#allocation3] sm:$0xff]
          %s325 = scalar_lea.vmem %s216, 8 [#allocation9]
          %326 = vst [vmem:[%s325] sm:$0xff] %v324
        $region44: #{tpu_custom_call.1} parent=27 // pred_fallthru
          _
        %s327 = sand.u32 %s98, 1
        %s328 = scalar_lea.sflag [#allocation6], %s327
        %s329 = sand.u32 %s98, 1
        %s330 = smul.addr %s329, 16
        %s331 = scalar_lea.vmem [#allocation9], %s330
        // Predicated region
        $region45: #{tpu_custom_call.1} parent=27 // pred_check
          %p332 = pneg %p108
        $region46: #{tpu_custom_call.1} parent=27 // pred_check_branch
          %334 = sbr.rel (%p332) target = $region48
        $region47: #{tpu_custom_call.1} parent=27 // pred_region
          %s336 = ssub.s32 256, 256
          %337 = vsyncadd %s328, %s336
          %s338 = smul.addr %s26, 2
          %s339 = smul.addr %s338, 128
          %s340 = scalar_lea.hbm %s2, %s339
          %s341 = sshll.u32 %s331, 4
          %s342 = int_to_ptr.vmem [resolvable:$true] %s341
          %347 = dma.vmem_to_hbm [thread:$0]  %s342, 256, %s340, %s328, 128, 128, 8
        $region48: #{tpu_custom_call.1} parent=27 // pred_fallthru
          _
      $region28: #{tpu_custom_call.1} parent=5 // pred_fallthru
        _
      %p348 = scmp.le.s32.totalorder 2, %s17
      // Predicated region
      $region49: #{tpu_custom_call.1} parent=5 // pred_check
        %p349 = pneg %p348
      $region50: #{tpu_custom_call.1} parent=5 // pred_check_branch
        %351 = sbr.rel (%p349) target = $region52
      $region51: #{tpu_custom_call.1} parent=5 // pred_region
        %s352 = ssub.s32 %s17, 2
        // Predicated region
        $region53: #{tpu_custom_call.1} parent=51 // pred_check
          %p353 = pneg %p114
        $region54: #{tpu_custom_call.1} parent=51 // pred_check_branch
          %355 = sbr.rel (%p353) target = $region56
        $region55: #{tpu_custom_call.1} parent=51 // pred_region
          %s356 = sand.u32 %s99, 1
          %s357 = scalar_lea.sflag [#allocation6], %s356
          %s358 = sand.u32 %s99, 1
          %s359 = smul.addr %s358, 16
          %s360 = scalar_lea.vmem [#allocation9], %s359
          %361 = dma.done %s357, 256
        $region56: #{tpu_custom_call.1} parent=51 // pred_fallthru
          _
      $region52: #{tpu_custom_call.1} parent=5 // pred_fallthru
        _
    $region6: #{tpu_custom_call.1} parent=1 // loop_footer
      %s21 = sadd.s32 1, %s17
    $region7: #{tpu_custom_call.1} parent=1 // loop_footer_branch
      %16 = sbr.rel target = $region3
    $region8: #{tpu_custom_call.1} parent=1 // loop_exit
      _
    %362 = vsyncpa [#allocation5], 1
    %s363 = scalar_lea.sflag [#allocation5], 1
    %364 = vsyncpa %s363, 1
    %365 = vsyncpa [#allocation8], 1
    %s366 = scalar_lea.sflag [#allocation8], 1
    %367 = vsyncpa %s366, 1
    %368 = vsyncpa [#allocation6], 1
    %s369 = scalar_lea.sflag [#allocation6], 1
    %370 = vsyncpa %s369, 1

</llo_original>
